<compile_context>
chip_gen: v5e
topology: v5e:2x2
jax: 0.10.0
libtpu: 0.0.40
codegen_flags: <defaults>
</compile_context>

<pallas_src>
import functools

import jax
import jax.numpy as jnp
from jax.experimental import pallas as pl
from jax.experimental.pallas import tpu as pltpu

NB_STATES = 3
SIZE_LATENT = 128
H1, H2, H3, H4, OUT = 16, 64, 64, 32, 1


def _round_up(x, m):
    return ((x + m - 1) // m) * m


def _mlp_kernel(state_ref, latent_ref,
                w1_ref, b1_ref,
                w2a_ref, w2b_ref, b2_ref,
                w3_ref, b3_ref,
                w4_ref, b4_ref,
                w5r_ref, b5_ref,
                o_ref, *, matmul_dtype):
    state = state_ref[...].astype(jnp.float32)    # (tb, 3)
    latent = latent_ref[...]                       # (tb, 128), f32 or bf16

    # ---- state_in: Linear(3, 16) + Tanh ------------------------------------
    # K=3 would burn a fully padded MXU pass per 8 rows; do it as 3 broadcast
    # FMAs on the VPU instead (same math, frees the binding MXU slot).
    w1 = w1_ref[...]                               # (3, 16) f32
    pre1 = b1_ref[...] + state[:, 0:1] * w1[0:1, :]
    pre1 = pre1 + state[:, 1:2] * w1[1:2, :]
    pre1 = pre1 + state[:, 2:3] * w1[2:3, :]
    h = jnp.tanh(pre1)                             # (tb, 16) f32

    # ---- main[0]: Linear(16+128, 64) + Tanh ---------------------------------
    # concat(h, latent) @ W2 folded into two matmuls; bf16 operands by default,
    # f32 accumulation.
    pre2 = (jnp.dot(h.astype(matmul_dtype), w2a_ref[...],
                    preferred_element_type=jnp.float32)
            + jnp.dot(latent.astype(matmul_dtype), w2b_ref[...],
                      preferred_element_type=jnp.float32)
            + b2_ref[...])
    h = jnp.tanh(pre2)                             # (tb, 64) f32

    # ---- main[2]: Linear(64, 64) + Tanh -------------------------------------
    h = jnp.tanh(jnp.dot(h.astype(matmul_dtype), w3_ref[...],
                         preferred_element_type=jnp.float32) + b3_ref[...])

    # ---- main[4]: Linear(64, 32) + Tanh -------------------------------------
    h = jnp.tanh(jnp.dot(h.astype(matmul_dtype), w4_ref[...],
                         preferred_element_type=jnp.float32) + b4_ref[...])

    # ---- colpred: Linear(32, 1) + sigmoid -----------------------------------
    # Lane reduction on the VPU/XLU instead of a 1-column MXU matmul.
    logits = jnp.sum(h * w5r_ref[...], axis=-1, keepdims=True) + b5_ref[...]
    o_ref[...] = jax.nn.sigmoid(logits)


def standalonelinear_forward(state, latent, params, *,
                             block_batch=8192,
                             matmul_dtype=jnp.bfloat16):
    """state: [B, 3] f32, latent: [B, 128] (f32 or bf16) -> [B, 1] f32."""
    B = state.shape[0]
    (w1, b1, w2a, w2b, b2, w3, b3, w4, b4, w5r, b5) = params

    # MXU-operand weights are cast once here (tiny, one-time). Everything that
    # stays on the VPU / in the f32 accumulation path remains f32.
    w2a = w2a.astype(matmul_dtype)
    w2b = w2b.astype(matmul_dtype)
    w3 = w3.astype(matmul_dtype)
    w4 = w4.astype(matmul_dtype)
    weights = (w1, b1, w2a, w2b, b2, w3, b3, w4, b4, w5r, b5)
    weight_bytes = sum(int(w.size) * w.dtype.itemsize for w in weights)

    # ---- VMEM budget (generation aware) -------------------------------------
    try:
        phys_vmem = int(pltpu.get_tpu_info().vmem_capacity_bytes)
    except Exception:
        phys_vmem = 64 * 1024 * 1024              # v7x-safe fallback
    # Leave 16 MiB headroom for Mosaic scratch; => ~48 MiB on v7x, ~112 MiB on
    # v5e/v6e (128 MiB physical).
    vmem_budget = max(32 * 1024 * 1024,
                      min(phys_vmem - 16 * 1024 * 1024, 112 * 1024 * 1024))

    # Per-row VMEM: streamed blocks are lane-padded to 128 and double-buffered
    # (state + latent + out), plus ~4 lane-padded f32 rows of activation
    # intermediates (conservative estimate).
    lane_row_f32 = 128 * 4
    latent_row = 128 * latent.dtype.itemsize
    per_row = 2 * (lane_row_f32 + latent_row + lane_row_f32) + 4 * lane_row_f32

    # ---- Batch tile ----------------------------------------------------------
    tb = max(8, min(block_batch, _round_up(B, 8)))
    tb = _round_up(tb, 8)
    tb_cap = max(8, ((vmem_budget - 4 * weight_bytes - (1 << 20)) // per_row)
                 // 8 * 8)
    tb = min(tb, tb_cap)
    # v7x has 2 TensorCores: guarantee >=2 "parallel" grid steps for big
    # batches so both cores get work (measured ~neutral on v5e/v6e).
    if B >= 512 and _round_up(B, tb) // tb < 2:
        tb = _round_up((B + 1) // 2, 8)

    # Pad batch to a multiple of the tile; padded rows are sliced off after.
    b_pad = _round_up(B, tb)
    if b_pad != B:
        pad = b_pad - B
        state = jnp.pad(state, ((0, pad), (0, 0)))
        latent = jnp.pad(latent, ((0, pad), (0, 0)))

    grid = (b_pad // tb,)

    def batch_spec(width):
        return pl.BlockSpec((tb, width), lambda i: (i, 0))

    def resident_spec(arr):
        # Constant index_map: DMAed once, stays resident in VMEM across steps.
        return pl.BlockSpec(arr.shape, lambda i: (0, 0))

    in_specs = [batch_spec(NB_STATES), batch_spec(SIZE_LATENT)]
    in_specs += [resident_spec(w) for w in weights]
    out_spec = batch_spec(OUT)

    flops_per_row = 2 * (NB_STATES * H1 + (H1 + SIZE_LATENT) * H2
                         + H2 * H3 + H3 * H4 + H4 * OUT)
    cost = pl.CostEstimate(
        flops=int(b_pad * flops_per_row),
        transcendentals=int(b_pad * (H1 + H2 + H3 + H4 + OUT)),
        bytes_accessed=int(b_pad * (NB_STATES * 4
                                    + SIZE_LATENT * latent.dtype.itemsize
                                    + OUT * 4) + weight_bytes),
    )

    kernel = functools.partial(_mlp_kernel, matmul_dtype=matmul_dtype)

    out = pl.pallas_call(
        kernel,
        out_shape=jax.ShapeDtypeStruct((b_pad, OUT), jnp.float32),
        grid=grid,
        in_specs=in_specs,
        out_specs=out_spec,
        compiler_params=pltpu.CompilerParams(
            dimension_semantics=("parallel",),
            vmem_limit_bytes=int(vmem_budget),
        ),
        cost_estimate=cost,
    )(state, latent, *weights)

    if b_pad != B:
        out = out[:B]
    return out


def init_params(key):
    """Deterministic parameter init (uniform like PyTorch's Linear default)."""
    def linear(k, fan_in, fan_out):
        kw, kb = jax.random.split(k)
        bound = 1.0 / jnp.sqrt(fan_in)
        w = jax.random.uniform(kw, (fan_in, fan_out), jnp.float32, -bound, bound)
        b = jax.random.uniform(kb, (1, fan_out), jnp.float32, -bound, bound)
        return w, b

    k1, k2, k3, k4, k5 = jax.random.split(key, 5)
    w1, b1 = linear(k1, NB_STATES, H1)                  # state_in
    w2_full, b2 = linear(k2, H1 + SIZE_LATENT, H2)      # main[0] on concat(h, latent)
    w2a, w2b = w2_full[:H1, :], w2_full[H1:, :]         # split for fused concat-matmul
    w3, b3 = linear(k3, H2, H3)                         # main[2]
    w4, b4 = linear(k4, H3, H4)                         # main[4]
    w5, b5 = linear(k5, H4, OUT)                        # colpred
    w5r = w5.T                                          # (1, 32) row for lane reduction
    return (w1, b1, w2a, w2b, b2, w3, b3, w4, b4, w5r, b5)


def _reference(state, latent, params):
    (w1, b1, w2a, w2b, b2, w3, b3, w4, b4, w5r, b5) = params
    h = jnp.tanh(state @ w1 + b1)
    h = jnp.tanh(h @ w2a + latent @ w2b + b2)
    h = jnp.tanh(h @ w3 + b3)
    h = jnp.tanh(h @ w4 + b4)
    return jax.nn.sigmoid(h @ w5r.T + b5)


if __name__ == "__main__":
    key = jax.random.PRNGKey(0)
    kp, ks, kl = jax.random.split(key, 3)
    params = init_params(kp)

    # 1) Structural check: f32-matmul path must match the reference tightly
    #    (validates the VPU layer-1 rewrite, folded concat, lane reduction).
    B = 8
    state = jax.random.normal(ks, (B, NB_STATES), jnp.float32)
    latent = jax.random.normal(kl, (B, SIZE_LATENT), jnp.float32)
    ref = _reference(state, latent, params)

    out_f32 = jax.block_until_ready(
        standalonelinear_forward(state, latent, params,
                                 matmul_dtype=jnp.float32))
    assert out_f32.shape == (B, OUT)
    assert jnp.allclose(out_f32, ref, atol=1e-5, rtol=1e-5)

    # 2) Default bf16-MXU path (f32 accumulate): relaxed tolerance by design.
    out_bf16 = jax.block_until_ready(
        standalonelinear_forward(state, latent, params))
    assert out_bf16.shape == (B, OUT)
    assert jnp.allclose(out_bf16, ref, atol=2e-2)

    # 3) Multi-tile + ragged-tail test (exercises the grid / padding path).
    B2 = 37
    ks2, kl2 = jax.random.split(jax.random.PRNGKey(1))
    state2 = jax.random.normal(ks2, (B2, NB_STATES), jnp.float32)
    latent2 = jax.random.normal(kl2, (B2, SIZE_LATENT), jnp.float32)
    out2 = jax.block_until_ready(
        standalonelinear_forward(state2, latent2, params, block_batch=16))
    ref2 = _reference(state2, latent2, params)
    assert out2.shape == (B2, OUT)
    assert jnp.allclose(out2, ref2, atol=2e-2)

    # 4) Larger batch: exercises the >=2-grid-step split (v7x dual-TC sharding).
    B3 = 600
    ks3, kl3 = jax.random.split(jax.random.PRNGKey(2))
    state3 = jax.random.normal(ks3, (B3, NB_STATES), jnp.float32)
    latent3 = jax.random.normal(kl3, (B3, SIZE_LATENT), jnp.float32)
    out3 = jax.block_until_ready(
        standalonelinear_forward(state3, latent3, params))
    ref3 = _reference(state3, latent3, params)
    assert out3.shape == (B3, OUT)
    assert jnp.allclose(out3, ref3, atol=2e-2)

    print("KERNEL_OK")
</pallas_src>

<mosaic_0001>
module attributes {stable_mosaic.version = 11 : i64} {
  func.func @_mlp_kernel(%arg0: i32, %arg1: memref<8x3xf32, #tpu.memory_space<vmem>>, %arg2: memref<8x128xf32, #tpu.memory_space<vmem>>, %arg3: memref<3x16xf32, #tpu.memory_space<vmem>>, %arg4: memref<1x16xf32, #tpu.memory_space<vmem>>, %arg5: memref<16x64xf32, #tpu.memory_space<vmem>>, %arg6: memref<128x64xf32, #tpu.memory_space<vmem>>, %arg7: memref<1x64xf32, #tpu.memory_space<vmem>>, %arg8: memref<64x64xf32, #tpu.memory_space<vmem>>, %arg9: memref<1x64xf32, #tpu.memory_space<vmem>>, %arg10: memref<64x32xf32, #tpu.memory_space<vmem>>, %arg11: memref<1x32xf32, #tpu.memory_space<vmem>>, %arg12: memref<1x32xf32, #tpu.memory_space<vmem>>, %arg13: memref<1x1xf32, #tpu.memory_space<vmem>>, %arg14: memref<8x1xf32, #tpu.memory_space<vmem>>) attributes {dimension_semantics = [#tpu.dimension_semantics<parallel>], iteration_bounds = array<i64: 1>, scalar_prefetch = 0 : i64, scratch_operands = 0 : i64, tpu.core_type = #tpu.core_type<tc>, window_params = [{transform_indices = @transform_0, window_bounds = array<i64: 8, 3>}, {transform_indices = @transform_1, window_bounds = array<i64: 8, 128>}, {pipeline_mode = #tpu.pipeline_mode<synchronous>, transform_indices = @transform_2, window_bounds = array<i64: 3, 16>}, {pipeline_mode = #tpu.pipeline_mode<synchronous>, transform_indices = @transform_3, window_bounds = array<i64: 1, 16>}, {pipeline_mode = #tpu.pipeline_mode<synchronous>, transform_indices = @transform_4, window_bounds = array<i64: 16, 64>}, {pipeline_mode = #tpu.pipeline_mode<synchronous>, transform_indices = @transform_5, window_bounds = array<i64: 128, 64>}, {pipeline_mode = #tpu.pipeline_mode<synchronous>, transform_indices = @transform_6, window_bounds = array<i64: 1, 64>}, {pipeline_mode = #tpu.pipeline_mode<synchronous>, transform_indices = @transform_7, window_bounds = array<i64: 64, 64>}, {pipeline_mode = #tpu.pipeline_mode<synchronous>, transform_indices = @transform_8, window_bounds = array<i64: 1, 64>}, {pipeline_mode = #tpu.pipeline_mode<synchronous>, transform_indices = @transform_9, window_bounds = array<i64: 64, 32>}, {pipeline_mode = #tpu.pipeline_mode<synchronous>, transform_indices = @transform_10, window_bounds = array<i64: 1, 32>}, {pipeline_mode = #tpu.pipeline_mode<synchronous>, transform_indices = @transform_11, window_bounds = array<i64: 1, 32>}, {pipeline_mode = #tpu.pipeline_mode<synchronous>, transform_indices = @transform_12, window_bounds = array<i64: 1, 1>}, {transform_indices = @transform_13, window_bounds = array<i64: 8, 1>}]} {
    %c0 = arith.constant 0 : index
    %c0_0 = arith.constant 0 : index
    %0 = vector.load %arg1[%c0, %c0_0] : memref<8x3xf32, #tpu.memory_space<vmem>>, vector<8x3xf32>
    %c0_1 = arith.constant 0 : index
    %c0_2 = arith.constant 0 : index
    %1 = vector.load %arg2[%c0_1, %c0_2] : memref<8x128xf32, #tpu.memory_space<vmem>>, vector<8x128xf32>
    %c0_3 = arith.constant 0 : index
    %c0_4 = arith.constant 0 : index
    %2 = vector.load %arg3[%c0_3, %c0_4] : memref<3x16xf32, #tpu.memory_space<vmem>>, vector<3x16xf32>
    %c0_5 = arith.constant 0 : index
    %c0_6 = arith.constant 0 : index
    %3 = vector.load %arg4[%c0_5, %c0_6] : memref<1x16xf32, #tpu.memory_space<vmem>>, vector<1x16xf32>
    %4 = vector.extract_strided_slice %0 {offsets = [0, 0], sizes = [8, 1], strides = [1, 1]} : vector<8x3xf32> to vector<8x1xf32>
    %5 = vector.extract_strided_slice %2 {offsets = [0, 0], sizes = [1, 16], strides = [1, 1]} : vector<3x16xf32> to vector<1x16xf32>
    %6 = vector.broadcast %4 : vector<8x1xf32> to vector<8x16xf32>
    %7 = vector.broadcast %5 : vector<1x16xf32> to vector<8x16xf32>
    %8 = arith.mulf %6, %7 : vector<8x16xf32>
    %9 = vector.broadcast %3 : vector<1x16xf32> to vector<8x16xf32>
    %10 = arith.addf %9, %8 : vector<8x16xf32>
    %11 = vector.extract_strided_slice %0 {offsets = [0, 1], sizes = [8, 1], strides = [1, 1]} : vector<8x3xf32> to vector<8x1xf32>
    %12 = vector.extract_strided_slice %2 {offsets = [1, 0], sizes = [1, 16], strides = [1, 1]} : vector<3x16xf32> to vector<1x16xf32>
    %13 = vector.broadcast %11 : vector<8x1xf32> to vector<8x16xf32>
    %14 = vector.broadcast %12 : vector<1x16xf32> to vector<8x16xf32>
    %15 = arith.mulf %13, %14 : vector<8x16xf32>
    %16 = arith.addf %10, %15 : vector<8x16xf32>
    %17 = vector.extract_strided_slice %0 {offsets = [0, 2], sizes = [8, 1], strides = [1, 1]} : vector<8x3xf32> to vector<8x1xf32>
    %18 = vector.extract_strided_slice %2 {offsets = [2, 0], sizes = [1, 16], strides = [1, 1]} : vector<3x16xf32> to vector<1x16xf32>
    %19 = vector.broadcast %17 : vector<8x1xf32> to vector<8x16xf32>
    %20 = vector.broadcast %18 : vector<1x16xf32> to vector<8x16xf32>
    %21 = arith.mulf %19, %20 : vector<8x16xf32>
    %22 = arith.addf %16, %21 : vector<8x16xf32>
    %23 = math.tanh %22 : vector<8x16xf32>
    %c0_7 = arith.constant 0 : index
    %c0_8 = arith.constant 0 : index
    %24 = vector.load %arg5[%c0_7, %c0_8] : memref<16x64xf32, #tpu.memory_space<vmem>>, vector<16x64xf32>
    %cst = arith.constant dense<0.000000e+00> : vector<8x64xf32>
    %25 = tpu.matmul %23, %24, %cst {dimension_numbers = #tpu.dot_dimension_numbers<[1], [0], [0], [1], [0, 0, 1, 1], [], []>} : vector<8x16xf32>, vector<16x64xf32>, vector<8x64xf32> -> vector<8x64xf32>
    %c0_9 = arith.constant 0 : index
    %c0_10 = arith.constant 0 : index
    %26 = vector.load %arg6[%c0_9, %c0_10] : memref<128x64xf32, #tpu.memory_space<vmem>>, vector<128x64xf32>
    %cst_11 = arith.constant dense<0.000000e+00> : vector<8x64xf32>
    %27 = tpu.matmul %1, %26, %cst_11 {dimension_numbers = #tpu.dot_dimension_numbers<[1], [0], [0], [1], [0, 0, 1, 1], [], []>} : vector<8x128xf32>, vector<128x64xf32>, vector<8x64xf32> -> vector<8x64xf32>
    %28 = arith.addf %25, %27 : vector<8x64xf32>
    %c0_12 = arith.constant 0 : index
    %c0_13 = arith.constant 0 : index
    %29 = vector.load %arg7[%c0_12, %c0_13] : memref<1x64xf32, #tpu.memory_space<vmem>>, vector<1x64xf32>
    %30 = vector.broadcast %29 : vector<1x64xf32> to vector<8x64xf32>
    %31 = arith.addf %28, %30 : vector<8x64xf32>
    %32 = math.tanh %31 : vector<8x64xf32>
    %c0_14 = arith.constant 0 : index
    %c0_15 = arith.constant 0 : index
    %33 = vector.load %arg8[%c0_14, %c0_15] : memref<64x64xf32, #tpu.memory_space<vmem>>, vector<64x64xf32>
    %cst_16 = arith.constant dense<0.000000e+00> : vector<8x64xf32>
    %34 = tpu.matmul %32, %33, %cst_16 {dimension_numbers = #tpu.dot_dimension_numbers<[1], [0], [0], [1], [0, 0, 1, 1], [], []>} : vector<8x64xf32>, vector<64x64xf32>, vector<8x64xf32> -> vector<8x64xf32>
    %c0_17 = arith.constant 0 : index
    %c0_18 = arith.constant 0 : index
    %35 = vector.load %arg9[%c0_17, %c0_18] : memref<1x64xf32, #tpu.memory_space<vmem>>, vector<1x64xf32>
    %36 = vector.broadcast %35 : vector<1x64xf32> to vector<8x64xf32>
    %37 = arith.addf %34, %36 : vector<8x64xf32>
    %38 = math.tanh %37 : vector<8x64xf32>
    %c0_19 = arith.constant 0 : index
    %c0_20 = arith.constant 0 : index
    %39 = vector.load %arg10[%c0_19, %c0_20] : memref<64x32xf32, #tpu.memory_space<vmem>>, vector<64x32xf32>
    %cst_21 = arith.constant dense<0.000000e+00> : vector<8x32xf32>
    %40 = tpu.matmul %38, %39, %cst_21 {dimension_numbers = #tpu.dot_dimension_numbers<[1], [0], [0], [1], [0, 0, 1, 1], [], []>} : vector<8x64xf32>, vector<64x32xf32>, vector<8x32xf32> -> vector<8x32xf32>
    %c0_22 = arith.constant 0 : index
    %c0_23 = arith.constant 0 : index
    %41 = vector.load %arg11[%c0_22, %c0_23] : memref<1x32xf32, #tpu.memory_space<vmem>>, vector<1x32xf32>
    %42 = vector.broadcast %41 : vector<1x32xf32> to vector<8x32xf32>
    %43 = arith.addf %40, %42 : vector<8x32xf32>
    %44 = math.tanh %43 : vector<8x32xf32>
    %c0_24 = arith.constant 0 : index
    %c0_25 = arith.constant 0 : index
    %45 = vector.load %arg12[%c0_24, %c0_25] : memref<1x32xf32, #tpu.memory_space<vmem>>, vector<1x32xf32>
    %46 = vector.broadcast %45 : vector<1x32xf32> to vector<8x32xf32>
    %47 = arith.mulf %44, %46 : vector<8x32xf32>
    %cst_26 = arith.constant dense<0.000000e+00> : vector<8xf32>
    %48 = vector.multi_reduction <add>, %47, %cst_26 [1] : vector<8x32xf32> to vector<8xf32>
    %49 = vector.shape_cast %48 : vector<8xf32> to vector<8x1xf32>
    %c0_27 = arith.constant 0 : index
    %c0_28 = arith.constant 0 : index
    %50 = vector.load %arg13[%c0_27, %c0_28] : memref<1x1xf32, #tpu.memory_space<vmem>>, vector<1x1xf32>
    %51 = vector.broadcast %50 : vector<1x1xf32> to vector<8x1xf32>
    %52 = arith.addf %49, %51 : vector<8x1xf32>
    %53 = arith.negf %52 : vector<8x1xf32>
    %54 = math.exp %53 : vector<8x1xf32>
    %cst_29 = arith.constant 1.000000e+00 : f32
    %55 = vector.broadcast %cst_29 : f32 to vector<8x1xf32>
    %56 = arith.addf %55, %54 : vector<8x1xf32>
    %57 = arith.divf %55, %56 : vector<8x1xf32>
    %c0_30 = arith.constant 0 : index
    %c0_31 = arith.constant 0 : index
    %58 = vector.load %arg14[%c0_30, %c0_31] : memref<8x1xf32, #tpu.memory_space<vmem>>, vector<8x1xf32>
    tpu.vector_store %arg14[%c0_30, %c0_31], %57 {strides = array<i32>} : memref<8x1xf32, #tpu.memory_space<vmem>>, vector<8x1xf32>,
    return
  }
  func.func @transform_0(%arg0: i32) -> (i32, i32) {
    %c0_i32 = arith.constant 0 : i32
    %c0_i32_0 = arith.constant 0 : i32
    return %arg0, %c0_i32 : i32, i32
  }
  func.func @transform_1(%arg0: i32) -> (i32, i32) {
    %c0_i32 = arith.constant 0 : i32
    %c0_i32_0 = arith.constant 0 : i32
    return %arg0, %c0_i32 : i32, i32
  }
  func.func @transform_2(%arg0: i32) -> (i32, i32) {
    %c0_i32 = arith.constant 0 : i32
    %c0_i32_0 = arith.constant 0 : i32
    %c0_i32_1 = arith.constant 0 : i32
    return %c0_i32, %c0_i32_0 : i32, i32
  }
  func.func @transform_3(%arg0: i32) -> (i32, i32) {
    %c0_i32 = arith.constant 0 : i32
    %c0_i32_0 = arith.constant 0 : i32
    %c0_i32_1 = arith.constant 0 : i32
    return %c0_i32, %c0_i32_0 : i32, i32
  }
  func.func @transform_4(%arg0: i32) -> (i32, i32) {
    %c0_i32 = arith.constant 0 : i32
    %c0_i32_0 = arith.constant 0 : i32
    %c0_i32_1 = arith.constant 0 : i32
    return %c0_i32, %c0_i32_0 : i32, i32
  }
  func.func @transform_5(%arg0: i32) -> (i32, i32) {
    %c0_i32 = arith.constant 0 : i32
    %c0_i32_0 = arith.constant 0 : i32
    %c0_i32_1 = arith.constant 0 : i32
    return %c0_i32, %c0_i32_0 : i32, i32
  }
  func.func @transform_6(%arg0: i32) -> (i32, i32) {
    %c0_i32 = arith.constant 0 : i32
    %c0_i32_0 = arith.constant 0 : i32
    %c0_i32_1 = arith.constant 0 : i32
    return %c0_i32, %c0_i32_0 : i32, i32
  }
  func.func @transform_7(%arg0: i32) -> (i32, i32) {
    %c0_i32 = arith.constant 0 : i32
    %c0_i32_0 = arith.constant 0 : i32
    %c0_i32_1 = arith.constant 0 : i32
    return %c0_i32, %c0_i32_0 : i32, i32
  }
  func.func @transform_8(%arg0: i32) -> (i32, i32) {
    %c0_i32 = arith.constant 0 : i32
    %c0_i32_0 = arith.constant 0 : i32
    %c0_i32_1 = arith.constant 0 : i32
    return %c0_i32, %c0_i32_0 : i32, i32
  }
  func.func @transform_9(%arg0: i32) -> (i32, i32) {
    %c0_i32 = arith.constant 0 : i32
    %c0_i32_0 = arith.constant 0 : i32
    %c0_i32_1 = arith.constant 0 : i32
    return %c0_i32, %c0_i32_0 : i32, i32
  }
  func.func @transform_10(%arg0: i32) -> (i32, i32) {
    %c0_i32 = arith.constant 0 : i32
    %c0_i32_0 = arith.constant 0 : i32
    %c0_i32_1 = arith.constant 0 : i32
    return %c0_i32, %c0_i32_0 : i32, i32
  }
  func.func @transform_11(%arg0: i32) -> (i32, i32) {
    %c0_i32 = arith.constant 0 : i32
    %c0_i32_0 = arith.constant 0 : i32
    %c0_i32_1 = arith.constant 0 : i32
    return %c0_i32, %c0_i32_0 : i32, i32
  }
  func.func @transform_12(%arg0: i32) -> (i32, i32) {
    %c0_i32 = arith.constant 0 : i32
    %c0_i32_0 = arith.constant 0 : i32
    %c0_i32_1 = arith.constant 0 : i32
    return %c0_i32, %c0_i32_0 : i32, i32
  }
  func.func @transform_13(%arg0: i32) -> (i32, i32) {
    %c0_i32 = arith.constant 0 : i32
    %c0_i32_0 = arith.constant 0 : i32
    return %arg0, %c0_i32 : i32, i32
  }
}

</mosaic_0001>

<llo_original>
// kernel: tpu_custom_call.1
$region0: #{tpu_custom_call.1}
  #allocation0 [shape = 'u32[]', space=smem, size = 0x4, offset = 0x4, fixed_abs, tag = 'smem constant byte address 0x4 - core index']
  #allocation1 [shape = 'u32[72,128]{1,0:T(1,128)}', space=vmem, size = 0x9000, scoped, tag = 'internal scratch']
  #allocation2 [shape = 'f32[1,1]{1,0:T(1,128)S(1)}', space=vmem, size = 0x200, scoped, tag = 'scoped memory for tpu_custom_call.1']
  %s0 = inlined_call_operand.vmem [shape: f32[8,3], index: 0, kind: input, shape index: {}]
  %s1 = inlined_call_operand.vmem [shape: f32[8,128], index: 1, kind: input, shape index: {}]
  %s2 = inlined_call_operand.vmem [shape: f32[3,16], index: 2, kind: input, shape index: {}]
  %s3 = inlined_call_operand.vmem [shape: f32[1,16], index: 3, kind: input, shape index: {}]
  %s4 = inlined_call_operand.vmem [shape: f32[16,64], index: 4, kind: input, shape index: {}]
  %s5 = inlined_call_operand.vmem [shape: f32[128,64], index: 5, kind: input, shape index: {}]
  %s6 = inlined_call_operand.vmem [shape: f32[1,64], index: 6, kind: input, shape index: {}]
  %s7 = inlined_call_operand.vmem [shape: f32[64,64], index: 7, kind: input, shape index: {}]
  %s8 = inlined_call_operand.vmem [shape: f32[1,64], index: 8, kind: input, shape index: {}]
  %s9 = inlined_call_operand.vmem [shape: f32[64,32], index: 9, kind: input, shape index: {}]
  %s10 = inlined_call_operand.vmem [shape: f32[1,32], index: 10, kind: input, shape index: {}]
  %s11 = inlined_call_operand.vmem [shape: f32[1,32], index: 11, kind: input, shape index: {}]
  %s12 = inlined_call_operand.<no memory space> [shape: f32[1,1], index: 12, kind: input, shape index: {}]
  %s13 = inlined_call_operand.vmem [shape: f32[8,1], index: 13, kind: output, shape index: {}]
  %s14 = sld [smem:[#allocation0]]
  $region62: #{tpu_custom_call.1} parent=0
    _
  %s16 = ssub.s32 1, %s14
  %s17 = scalar_select 0, %s16, %s14
  %v18 = vstv %s12
  %19 = vst [vmem:[#allocation2] sm:$0x1] %v18
  // Predicated region
  $region2: #{tpu_custom_call.1} parent=0 // pred_check
    _
  $region3: #{tpu_custom_call.1} parent=0 // pred_check_branch
    %21 = sbr.rel (0) target = $region5
  $region4: #{tpu_custom_call.1} parent=0 // pred_region
    _
  $region5: #{tpu_custom_call.1} parent=0 // pred_fallthru
    _
  // Predicated region
  $region6: #{tpu_custom_call.1} parent=0 // pred_check
    _
  $region7: #{tpu_custom_call.1} parent=0 // pred_check_branch
    %23 = sbr.rel (0) target = $region9
  $region8: #{tpu_custom_call.1} parent=0 // pred_region
    _
  $region9: #{tpu_custom_call.1} parent=0 // pred_fallthru
    _
  // Predicated region
  $region10: #{tpu_custom_call.1} parent=0 // pred_check
    _
  $region11: #{tpu_custom_call.1} parent=0 // pred_check_branch
    %25 = sbr.rel (0) target = $region13
  $region12: #{tpu_custom_call.1} parent=0 // pred_region
    _
  $region13: #{tpu_custom_call.1} parent=0 // pred_fallthru
    _
  // Predicated region
  $region14: #{tpu_custom_call.1} parent=0 // pred_check
    _
  $region15: #{tpu_custom_call.1} parent=0 // pred_check_branch
    %27 = sbr.rel (0) target = $region17
  $region16: #{tpu_custom_call.1} parent=0 // pred_region
    _
  $region17: #{tpu_custom_call.1} parent=0 // pred_fallthru
    _
  // Predicated region
  $region18: #{tpu_custom_call.1} parent=0 // pred_check
    _
  $region19: #{tpu_custom_call.1} parent=0 // pred_check_branch
    %29 = sbr.rel (0) target = $region21
  $region20: #{tpu_custom_call.1} parent=0 // pred_region
    _
  $region21: #{tpu_custom_call.1} parent=0 // pred_fallthru
    _
  // Predicated region
  $region22: #{tpu_custom_call.1} parent=0 // pred_check
    _
  $region23: #{tpu_custom_call.1} parent=0 // pred_check_branch
    %31 = sbr.rel (0) target = $region25
  $region24: #{tpu_custom_call.1} parent=0 // pred_region
    _
  $region25: #{tpu_custom_call.1} parent=0 // pred_fallthru
    _
  // Predicated region
  $region26: #{tpu_custom_call.1} parent=0 // pred_check
    _
  $region27: #{tpu_custom_call.1} parent=0 // pred_check_branch
    %33 = sbr.rel (0) target = $region29
  $region28: #{tpu_custom_call.1} parent=0 // pred_region
    _
  $region29: #{tpu_custom_call.1} parent=0 // pred_fallthru
    _
  // Predicated region
  $region30: #{tpu_custom_call.1} parent=0 // pred_check
    _
  $region31: #{tpu_custom_call.1} parent=0 // pred_check_branch
    %35 = sbr.rel (0) target = $region33
  $region32: #{tpu_custom_call.1} parent=0 // pred_region
    _
  $region33: #{tpu_custom_call.1} parent=0 // pred_fallthru
    _
  // Predicated region
  $region34: #{tpu_custom_call.1} parent=0 // pred_check
    _
  $region35: #{tpu_custom_call.1} parent=0 // pred_check_branch
    %37 = sbr.rel (0) target = $region37
  $region36: #{tpu_custom_call.1} parent=0 // pred_region
    _
  $region37: #{tpu_custom_call.1} parent=0 // pred_fallthru
    _
  // Predicated region
  $region38: #{tpu_custom_call.1} parent=0 // pred_check
    _
  $region39: #{tpu_custom_call.1} parent=0 // pred_check_branch
    %39 = sbr.rel (0) target = $region41
  $region40: #{tpu_custom_call.1} parent=0 // pred_region
    _
  $region41: #{tpu_custom_call.1} parent=0 // pred_fallthru
    _
  // Predicated region
  $region42: #{tpu_custom_call.1} parent=0 // pred_check
    _
  $region43: #{tpu_custom_call.1} parent=0 // pred_check_branch
    %41 = sbr.rel (0) target = $region45
  $region44: #{tpu_custom_call.1} parent=0 // pred_region
    _
  $region45: #{tpu_custom_call.1} parent=0 // pred_fallthru
    _
  // Predicated region
  $region46: #{tpu_custom_call.1} parent=0 // pred_check
    _
  $region47: #{tpu_custom_call.1} parent=0 // pred_check_branch
    %43 = sbr.rel (0) target = $region49
  $region48: #{tpu_custom_call.1} parent=0 // pred_region
    _
  $region49: #{tpu_custom_call.1} parent=0 // pred_fallthru
    _
  // Predicated region
  $region50: #{tpu_custom_call.1} parent=0 // pred_check
    _
  $region51: #{tpu_custom_call.1} parent=0 // pred_check_branch
    %45 = sbr.rel (0) target = $region53
  $region52: #{tpu_custom_call.1} parent=0 // pred_region
    _
  $region53: #{tpu_custom_call.1} parent=0 // pred_fallthru
    _
  %v46 = vld [vmem:[%s0] sm:$0xff]
  %v47 = vld [vmem:[%s1] sm:$0xff]
  %v48 = vld [vmem:[%s2] sm:$0x7]
  %v49 = vld [vmem:[%s3] sm:$0x1]
  %51 = vset.pattern.permute.xlu0 0
  %52 = vperm.xlu0 %51, %v46
  %v53 = vpop.permute.xlu0 %52
  %v55 = vperm.slane %v48, 0
  %v56 = vmul.f32 %v53, %v55
  %v58 = vperm.slane %v49, 0
  %v60 = vadd.f32 %v58, %v56
  %61 = vset.pattern.permute.xlu0 1
  %62 = vperm.xlu0 %61, %v46
  %v63 = vpop.permute.xlu0 %62
  %v65 = vperm.slane %v48, 1
  %v66 = vmul.f32 %v63, %v65
  %v67 = vadd.f32 %v60, %v66
  %68 = vset.pattern.permute.xlu0 2
  %69 = vperm.xlu0 %68, %v46
  %v70 = vpop.permute.xlu0 %69
  %v72 = vperm.slane %v48, 2
  %v73 = vmul.f32 %v70, %v72
  %v74 = vadd.f32 %v67, %v73
  %v75 = vtanh.pop %v74
  %v76 = vld [vmem:[%s4] sm:$0xff]
  %v77 = vld [vmem:[%s4 + $0x8] sm:$0xff]
  %v78 = vld [vmem:[%s5] sm:$0xff]
  %v79 = vld [vmem:[%s5 + $0x8] sm:$0xff]
  %v80 = vld [vmem:[%s5 + $0x10] sm:$0xff]
  %v81 = vld [vmem:[%s5 + $0x18] sm:$0xff]
  %v82 = vld [vmem:[%s5 + $0x20] sm:$0xff]
  %v83 = vld [vmem:[%s5 + $0x28] sm:$0xff]
  %v84 = vld [vmem:[%s5 + $0x30] sm:$0xff]
  %v85 = vld [vmem:[%s5 + $0x38] sm:$0xff]
  %v86 = vld [vmem:[%s5 + $0x40] sm:$0xff]
  %v87 = vld [vmem:[%s5 + $0x48] sm:$0xff]
  %v88 = vld [vmem:[%s5 + $0x50] sm:$0xff]
  %v89 = vld [vmem:[%s5 + $0x58] sm:$0xff]
  %v90 = vld [vmem:[%s5 + $0x60] sm:$0xff]
  %v91 = vld [vmem:[%s5 + $0x68] sm:$0xff]
  %v92 = vld [vmem:[%s5 + $0x70] sm:$0xff]
  %v93 = vld [vmem:[%s5 + $0x78] sm:$0xff]
  %94 = vmatpush.msra.mxu0 %v93
  %95 = vmatpush.msra.mxu0 %v92
  %96 = vmatpush.msra.mxu0 %v91
  %97 = vmatpush.msra.mxu0 %v90
  %98 = vmatpush.msra.mxu0 %v89
  %99 = vmatpush.msra.mxu0 %v88
  %100 = vmatpush.msra.mxu0 %v87
  %101 = vmatpush.msra.mxu0 %v86
  %102 = vmatpush.msra.mxu0 %v85
  %103 = vmatpush.msra.mxu0 %v84
  %104 = vmatpush.msra.mxu0 %v83
  %105 = vmatpush.msra.mxu0 %v82
  %106 = vmatpush.msra.mxu0 %v81
  %107 = vmatpush.msra.mxu0 %v80
  %108 = vmatpush.msra.mxu0 %v79
  %109 = vmatpush.msra.mxu0 %v78
  %110 = vmatmul.f32.gmra.mxu0 %v47
  %v111 = vpop.f32.mrf.mxu0
  %v112 = vadd.f32 0.0, %v111
  %113 = vdwg.mxu0
  %vm114 = vcmask 130048
  %v116 = vsel %vm114, %v75, 0
  %118 = vmatpush.msra.mxu0 0.0
  %119 = vmatpush.msra.mxu0 0.0
  %120 = vmatpush.msra.mxu0 0.0
  %121 = vmatpush.msra.mxu0 0.0
  %122 = vmatpush.msra.mxu0 0.0
  %123 = vmatpush.msra.mxu0 0.0
  %124 = vmatpush.msra.mxu0 0.0
  %125 = vmatpush.msra.mxu0 0.0
  %126 = vmatpush.msra.mxu0 0.0
  %127 = vmatpush.msra.mxu0 0.0
  %128 = vmatpush.msra.mxu0 0.0
  %129 = vmatpush.msra.mxu0 0.0
  %130 = vmatpush.msra.mxu0 0.0
  %131 = vmatpush.msra.mxu0 0.0
  %132 = vmatpush.msra.mxu0 %v77
  %133 = vmatpush.msra.mxu0 %v76
  %134 = vmatmul.f32.gmra.mxu0 %v116
  %v135 = vpop.f32.mrf.mxu0
  %v136 = vadd.f32 %v112, %v135
  %137 = vdwg.mxu0
  %v138 = vld [vmem:[%s6] sm:$0x1]
  %v140 = vperm.slane %v138, 0
  %v142 = vadd.f32 %v136, %v140
  %v143 = vtanh.pop %v142
  %v144 = vld [vmem:[%s7] sm:$0xff]
  %v145 = vld [vmem:[%s7 + $0x8] sm:$0xff]
  %v146 = vld [vmem:[%s7 + $0x10] sm:$0xff]
  %v147 = vld [vmem:[%s7 + $0x18] sm:$0xff]
  %v148 = vld [vmem:[%s7 + $0x20] sm:$0xff]
  %v149 = vld [vmem:[%s7 + $0x28] sm:$0xff]
  %v150 = vld [vmem:[%s7 + $0x30] sm:$0xff]
  %v151 = vld [vmem:[%s7 + $0x38] sm:$0xff]
  %v152 = vld [vmem:[%s8] sm:$0x1]
  %v154 = vperm.slane %v152, 0
  %vm156 = vcmask 523264
  %v158 = vsel %vm156, %v143, 0
  %160 = vmatpush.msra.mxu0 0.0
  %161 = vmatpush.msra.mxu0 0.0
  %162 = vmatpush.msra.mxu0 0.0
  %163 = vmatpush.msra.mxu0 0.0
  %164 = vmatpush.msra.mxu0 0.0
  %165 = vmatpush.msra.mxu0 0.0
  %166 = vmatpush.msra.mxu0 0.0
  %167 = vmatpush.msra.mxu0 0.0
  %168 = vmatpush.msra.mxu0 %v151
  %169 = vmatpush.msra.mxu0 %v150
  %170 = vmatpush.msra.mxu0 %v149
  %171 = vmatpush.msra.mxu0 %v148
  %172 = vmatpush.msra.mxu0 %v147
  %173 = vmatpush.msra.mxu0 %v146
  %174 = vmatpush.msra.mxu0 %v145
  %175 = vmatpush.msra.mxu0 %v144
  %176 = vmatmul.f32.gmra.mxu0 %v158
  %v177 = vpop.f32.mrf.mxu0
  %v178 = vadd.f32 %v154, %v177
  %179 = vdwg.mxu0
  %v180 = vtanh.pop %v178
  %v181 = vld [vmem:[%s9] sm:$0xff]
  %v182 = vld [vmem:[%s9 + $0x8] sm:$0xff]
  %v183 = vld [vmem:[%s9 + $0x10] sm:$0xff]
  %v184 = vld [vmem:[%s9 + $0x18] sm:$0xff]
  %v185 = vld [vmem:[%s9 + $0x20] sm:$0xff]
  %v186 = vld [vmem:[%s9 + $0x28] sm:$0xff]
  %v187 = vld [vmem:[%s9 + $0x30] sm:$0xff]
  %v188 = vld [vmem:[%s9 + $0x38] sm:$0xff]
  %v189 = vld [vmem:[%s10] sm:$0x1]
  %v191 = vperm.slane %v189, 0
  %v194 = vsel %vm156, %v180, 0
  %196 = vmatpush.msra.mxu0 0.0
  %197 = vmatpush.msra.mxu0 0.0
  %198 = vmatpush.msra.mxu0 0.0
  %199 = vmatpush.msra.mxu0 0.0
  %200 = vmatpush.msra.mxu0 0.0
  %201 = vmatpush.msra.mxu0 0.0
  %202 = vmatpush.msra.mxu0 0.0
  %203 = vmatpush.msra.mxu0 0.0
  %204 = vmatpush.msra.mxu0 %v188
  %205 = vmatpush.msra.mxu0 %v187
  %206 = vmatpush.msra.mxu0 %v186
  %207 = vmatpush.msra.mxu0 %v185
  %208 = vmatpush.msra.mxu0 %v184
  %209 = vmatpush.msra.mxu0 %v183
  %210 = vmatpush.msra.mxu0 %v182
  %211 = vmatpush.msra.mxu0 %v181
  %212 = vmatmul.f32.gmra.mxu0 %v194
  %v213 = vpop.f32.mrf.mxu0
  %v214 = vadd.f32 %v191, %v213
  %215 = vdwg.mxu0
  %v216 = vtanh.pop %v214
  %v217 = vld [vmem:[%s11] sm:$0x1]
  %v219 = vperm.slane %v217, 0
  %v221 = vmul.f32 %v216, %v219
  %vm222 = vcmask 261120
  %v223 = vsel %vm222, %v221, 0.0
  %224 = vadd.xlane.f32.xlu0 %v223
  %v225 = vpop.xlane.xlu0 %224
  %v226 = vld [vmem:[#allocation2] sm:$0x1]
  %v228 = vperm.slane %v226, 0
  %v230 = vadd.f32 %v225, %v228
  %v231 = vxor.u32 %v230, 2147483648
  %v232 = vmul.f32 %v231, 1.442695
  %v233 = vpow.pop %v232
  %v234 = vadd.f32 %v233, 1.0
  %v235 = vrcp.pop %v234
  %v236 = vmul.f32 %v234, %v235
  %v237 = vsub.f32 1.0, %v236
  %v238 = vmul.f32 %v235, %v237
  %v239 = vadd.f32 %v235, %v238
  %vm240 = vweird.f32 %v234
  %vm241 = vweird.f32 %v235
  %vm242 = vmor %vm240, %vm241
  %v243 = vsel %vm242, %v235, %v239
  %v244 = vand.u32 2147483647, %v234
  %vm245 = vcmp.eq.f32.partialorder %v244, 8.507059e+37
  %v246 = vand.u32 %v234, 2147483648
  %v247 = vor.u32 1.1754944e-38, %v246
  %v248 = vsel %vm245, %v247, %v243
  %v249 = vmul.f32 1.0, %v248
  %vm250 = vcmask 7168
  %251 = vst.msk [vmem:[%s13] sm:$0xff] %vm250, %v249
  // Predicated region
  $region54: #{tpu_custom_call.1} parent=0 // pred_check
    _
  $region55: #{tpu_custom_call.1} parent=0 // pred_check_branch
    %253 = sbr.rel (0) target = $region57
  $region56: #{tpu_custom_call.1} parent=0 // pred_region
    _
  $region57: #{tpu_custom_call.1} parent=0 // pred_fallthru
    _
  // Predicated region
  $region58: #{tpu_custom_call.1} parent=0 // pred_check
    _
  $region59: #{tpu_custom_call.1} parent=0 // pred_check_branch
    %255 = sbr.rel (0) target = $region61
  $region60: #{tpu_custom_call.1} parent=0 // pred_region
    _
  $region61: #{tpu_custom_call.1} parent=0 // pred_fallthru
    _

</llo_original>
